<compile_context>
chip_gen: v5e
topology: v5e:2x2
jax: 0.10.0
libtpu: 0.0.40
codegen_flags: <defaults>
</compile_context>

<pallas_src>
import math
from typing import NamedTuple, Optional

import jax
import jax.numpy as jnp
from jax.experimental import pallas as pl
from jax.experimental.pallas import tpu as pltpu


def _round_up(v, m):
    return ((v + m - 1) // m) * m


def _vmem_capacity_bytes():
    try:
        return int(pltpu.get_tpu_info().vmem_capacity_bytes)
    except Exception:
        return 64 << 20  # conservative default (v7x per-TensorCore VMEM)


def _pick_tile(dim, cap, want_multiple_tiles):
    """Largest multiple of 128 <= cap that evenly divides round_up(dim, 128).

    If `want_multiple_tiles`, additionally require >= 2 tiles whenever the
    padded dim exceeds 128 (keeps both v7x TensorCores busy on the 'parallel'
    grid axes without adding padding).
    """
    p = _round_up(dim, 128)
    best = 128
    cand = 128
    limit = min(p, cap)
    while cand <= limit:
        if p % cand == 0:
            if not (want_multiple_tiles and p > 128 and p // cand < 2):
                best = cand
        cand += 128
    return best


# ----------------------------- kernels ---------------------------------------

def _masked_linear_kernel(x_ref, w_ref, m_ref, b_ref, o_ref, acc_ref=None):
    """One (i, j, k) step of y = x @ (W^T ∘ mask) + b  (NN layout, no transpose).

    x_ref: (tm, tk)   w_ref: (tk, tn) weight^T   m_ref: (tk, tn) mask (int8/bf16)
    b_ref: (1, tn)    o_ref: (tm, tn)            acc_ref: optional f32 scratch
    When the output dtype is f32, o_ref itself is the accumulator (resident
    across k since its index_map is constant in k).
    """
    acc = o_ref if acc_ref is None else acc_ref
    k = pl.program_id(2)

    @pl.when(k == 0)
    def _():
        # Fold the bias into the accumulator init (saves the epilogue add).
        acc[...] = jnp.broadcast_to(b_ref[...].astype(acc.dtype), acc.shape)

    # Elementwise mask on the VPU (int8 -> compute dtype upcast), then a plain
    # NN matmul on the MXU with f32 accumulation.  No transpose in the k-loop.
    wm = w_ref[...] * m_ref[...].astype(w_ref.dtype)              # (tk, tn)
    acc[...] += jnp.dot(x_ref[...], wm, preferred_element_type=jnp.float32)

    if acc_ref is not None:
        @pl.when(k == pl.num_programs(2) - 1)
        def _():
            o_ref[...] = acc_ref[...].astype(o_ref.dtype)


def _linear_kernel(x_ref, w_ref, b_ref, o_ref, acc_ref=None):
    """Plain fused linear y = x @ W_kn + b (mask already folded into W_kn)."""
    acc = o_ref if acc_ref is None else acc_ref
    k = pl.program_id(2)

    @pl.when(k == 0)
    def _():
        acc[...] = jnp.broadcast_to(b_ref[...].astype(acc.dtype), acc.shape)

    acc[...] += jnp.dot(x_ref[...], w_ref[...],
                        preferred_element_type=jnp.float32)

    if acc_ref is not None:
        @pl.when(k == pl.num_programs(2) - 1)
        def _():
            o_ref[...] = acc_ref[...].astype(o_ref.dtype)


# ----------------------------- wrapper ----------------------------------------

class MaskedLinearParams(NamedTuple):
    w_kn: jax.Array                    # (Kp, Np) weight^T, compute dtype, padded
    mask_kn: jax.Array                 # (Kp, Np) mask, int8 (binary) or compute dtype
    bias2d: jax.Array                  # (1, Np) float32
    w_masked_kn: Optional[jax.Array]   # optional cached W^T ∘ mask (inference)
    in_features: int
    out_features: int
    tk: int
    tn: int
    compute_dtype: jnp.dtype


def prepare_masked_linear_params(weight, mask, bias, *,
                                 compute_dtype=jnp.bfloat16,
                                 binary_mask=True,
                                 prefold=False):
    """Hoist per-call transpose / pad / dtype casts out of the forward path.

    weight: (out, in)   mask: (in, out)   bias: (out,)
    binary_mask: mask values are {0,1} -> stored exactly as int8 (smaller HBM
      stream).  Set False for arbitrary-valued masks (stored in compute dtype).
    prefold: also cache W^T ∘ mask (use for frozen-weight inference).
    """
    N, K = weight.shape
    assert mask.shape == (K, N) and bias.shape == (N,)

    cap = _vmem_capacity_bytes()
    big_vmem = cap >= (96 << 20)            # v5e / v6e (128 MiB) vs v7x (64 MiB)
    t_cap = 1024 if big_vmem else 512

    tk = _pick_tile(K, t_cap, want_multiple_tiles=False)
    tn = _pick_tile(N, t_cap, want_multiple_tiles=True)
    Kp, Np = _round_up(K, tk), _round_up(N, tn)

    w_kn = jnp.pad(weight.T.astype(compute_dtype), ((0, Kp - K), (0, Np - N)))
    mask_store_dtype = jnp.int8 if binary_mask else compute_dtype
    mask_kn = jnp.pad(mask.astype(mask_store_dtype), ((0, Kp - K), (0, Np - N)))
    bias2d = jnp.pad(bias.astype(jnp.float32), (0, Np - N)).reshape(1, Np)

    w_masked_kn = None
    if prefold:
        wm = weight.T.astype(jnp.float32) * mask.astype(jnp.float32)
        w_masked_kn = jnp.pad(wm.astype(compute_dtype),
                              ((0, Kp - K), (0, Np - N)))

    return MaskedLinearParams(w_kn, mask_kn, bias2d, w_masked_kn,
                              K, N, tk, tn, jnp.dtype(compute_dtype))


# In-kernel masking re-streams only the small mask per batch tile; the XLA
# pre-fold costs an extra ~2.5x weight-sized HBM pass.  Break-even ~4-5 tiles.
FUSE_MAX_BATCH_TILES = 4


def masked_linear_apply(x, params: MaskedLinearParams, *, tm=None):
    """y = x @ (weight * mask.T).T + bias, using prepared (cached) params."""
    M, K = x.shape
    assert K == params.in_features
    N = params.out_features
    out_dtype = x.dtype
    cdt = params.compute_dtype
    tk, tn = params.tk, params.tn
    Kp, Np = params.w_kn.shape

    # Sublane-aligned tm (16 for 2-byte compute dtype, 8 for f32), cap 512 so
    # the masked weight is re-streamed from HBM as few times as possible.
    sub = 16 if jnp.dtype(cdt).itemsize == 2 else 8
    if tm is None:
        tm = min(_round_up(M, sub), 512)
    Mp = _round_up(M, tm)

    # Zero padding contributes exactly zero to the K-reduction.
    x_p = jnp.pad(x.astype(cdt), ((0, Mp - M), (0, Kp - K)))

    n_batch_tiles = Mp // tm
    grid = (n_batch_tiles, Np // tn, Kp // tk)

    c_isz = jnp.dtype(cdt).itemsize
    o_isz = jnp.dtype(out_dtype).itemsize
    use_scratch = out_dtype != jnp.float32   # f32 output: accumulate in o_ref

    prefolded = params.w_masked_kn is not None
    fuse_mask = (not prefolded) and n_batch_tiles <= FUSE_MAX_BATCH_TILES

    if fuse_mask:
        kernel = _masked_linear_kernel
        inputs = (x_p, params.w_kn, params.mask_kn, params.bias2d)
        m_isz = jnp.dtype(params.mask_kn.dtype).itemsize
        in_specs = [
            pl.BlockSpec((tm, tk), lambda i, j, k: (i, k)),   # x
            pl.BlockSpec((tk, tn), lambda i, j, k: (k, j)),   # weight^T (K, N)
            pl.BlockSpec((tk, tn), lambda i, j, k: (k, j)),   # mask     (K, N)
            pl.BlockSpec((1, tn), lambda i, j, k: (0, j)),    # bias
        ]
        est = 2 * (tm * tk * c_isz + tk * tn * c_isz + tk * tn * m_isz + tn * 4)
    else:
        if prefolded:
            w = params.w_masked_kn
        else:
            # Many batch tiles: fold the mask once in XLA so the mask stream
            # and the VPU multiply do not scale with the number of batch tiles.
            w = params.w_kn * params.mask_kn.astype(cdt)
        kernel = _linear_kernel
        inputs = (x_p, w, params.bias2d)
        in_specs = [
            pl.BlockSpec((tm, tk), lambda i, j, k: (i, k)),   # x
            pl.BlockSpec((tk, tn), lambda i, j, k: (k, j)),   # masked weight^T
            pl.BlockSpec((1, tn), lambda i, j, k: (0, j)),    # bias
        ]
        est = 2 * (tm * tk * c_isz + tk * tn * c_isz + tn * 4)

    est += 2 * tm * tn * o_isz               # output (double-buffered)
    scratch_shapes = []
    if use_scratch:
        scratch_shapes = [pltpu.VMEM((tm, tn), jnp.float32)]
        est += tm * tn * 4

    # VMEM budget with headroom: ~48 MiB ceiling on v7x (64 MiB physical),
    # ~96 MiB on v5e/v6e (128 MiB physical).
    cap = _vmem_capacity_bytes()
    ceiling = max(min(cap * 3 // 4, cap - (8 << 20)), 32 << 20)
    vmem_limit = int(min(max(2 * est, 32 << 20), ceiling))

    out_p = pl.pallas_call(
        kernel,
        out_shape=jax.ShapeDtypeStruct((Mp, Np), out_dtype),
        grid_spec=pltpu.PrefetchScalarGridSpec(
            num_scalar_prefetch=0,
            grid=grid,
            in_specs=in_specs,
            out_specs=pl.BlockSpec((tm, tn), lambda i, j, k: (i, j)),
            scratch_shapes=scratch_shapes,
        ),
        compiler_params=pltpu.CompilerParams(
            dimension_semantics=("parallel", "parallel", "arbitrary"),
            vmem_limit_bytes=vmem_limit,
        ),
    )(*inputs)

    return out_p[:M, :N]


def masked_linear(x, weight, mask, bias, *, compute_dtype=jnp.bfloat16,
                  binary_mask=True, tm=None):
    """One-shot convenience wrapper.  For repeated calls with the same
    parameters, call `prepare_masked_linear_params` once and reuse it."""
    params = prepare_masked_linear_params(
        weight, mask, bias, compute_dtype=compute_dtype, binary_mask=binary_mask)
    return masked_linear_apply(x, params, tm=tm)


# ----------------------------- init / demo ------------------------------------

def init_masked_linear_params(key, in_features, out_features):
    """Deterministic re-implementation of MaskedLinear.reset_parameters."""
    kw, kb, kbi, kmask = jax.random.split(key, 4)
    stdv = 1.0 / math.sqrt(in_features)
    weight = jax.random.uniform(
        kw, (out_features, in_features), jnp.float32, -stdv, stdv)
    bias = jax.random.uniform(kb, (out_features,), jnp.float32, -stdv, stdv)
    stdv_in = 1.0 / math.sqrt(in_features)
    # bias_in is defined by the module but unused in forward(); kept for parity.
    bias_in = jax.random.uniform(
        kbi, (in_features,), jnp.float32, -stdv_in, stdv_in)
    # Non-trivial 0/1 mask, shape (in_features, out_features), stored f32 like
    # the PyTorch Parameter (the wrapper re-packs it to int8).
    mask = (jax.random.uniform(kmask, (in_features, out_features)) > 0.3
            ).astype(jnp.float32)
    return weight, bias, bias_in, mask


if __name__ == "__main__":
    key = jax.random.PRNGKey(0)
    k_param, k_x, k_x2 = jax.random.split(key, 3)

    batch, in_features, out_features = 8, 32, 16
    weight, bias, bias_in, mask = init_masked_linear_params(
        k_param, in_features, out_features)

    def reference(xv):
        # Pure-JAX reference of the PyTorch forward pass (f32).
        return xv.astype(jnp.float32) @ (weight * mask.T).T + bias[None, :]

    # Prepared params: transpose / pad / casts hoisted out of the forward path.
    params_bf16 = prepare_masked_linear_params(
        weight, mask, bias, compute_dtype=jnp.bfloat16, binary_mask=True)

    # 1) Fused-mask path (single batch tile), bf16 MXU, f32 output.
    x = jax.random.normal(k_x, (batch, in_features), jnp.float32)
    y = jax.block_until_ready(masked_linear_apply(x, params_bf16))
    assert y.shape == (batch, out_features)
    assert jnp.allclose(y, reference(x), atol=5e-2, rtol=5e-2), \
        "mismatch vs reference (fused bf16 path)"

    # 2) Pre-folded path (batch spans >4 tiles; forced via small tm).
    x2 = jax.random.normal(k_x2, (80, in_features), jnp.float32)
    y2 = jax.block_until_ready(masked_linear_apply(x2, params_bf16, tm=16))
    assert y2.shape == (80, out_features)
    assert jnp.allclose(y2, reference(x2), atol=5e-2, rtol=5e-2), \
        "mismatch vs reference (pre-folded bf16 path)"

    # 3) Exact f32 compute path (tight tolerance), one-shot wrapper.
    y3 = jax.block_until_ready(
        masked_linear(x, weight, mask, bias, compute_dtype=jnp.float32))
    assert jnp.allclose(y3, reference(x), atol=1e-5, rtol=1e-5), \
        "mismatch vs reference (exact f32 path)"

    # 4) bf16 output exercises the f32-scratch accumulator variant.
    xb = x.astype(jnp.bfloat16)
    y4 = jax.block_until_ready(masked_linear_apply(xb, params_bf16))
    assert y4.dtype == jnp.bfloat16
    assert jnp.allclose(y4.astype(jnp.float32), reference(x),
                        atol=7e-2, rtol=7e-2), \
        "mismatch vs reference (bf16-output path)"

    print("KERNEL_OK")
</pallas_src>

<mosaic_0001>
module attributes {stable_mosaic.version = 11 : i64} {
  func.func @_masked_linear_kernel(%arg0: i32, %arg1: i32, %arg2: i32, %arg3: memref<16x128xbf16, #tpu.memory_space<vmem>>, %arg4: memref<128x128xbf16, #tpu.memory_space<vmem>>, %arg5: memref<128x128xi8, #tpu.memory_space<vmem>>, %arg6: memref<1x128xf32, #tpu.memory_space<vmem>>, %arg7: memref<16x128xf32, #tpu.memory_space<vmem>>) attributes {dimension_semantics = [#tpu.dimension_semantics<parallel>, #tpu.dimension_semantics<parallel>, #tpu.dimension_semantics<arbitrary>], iteration_bounds = array<i64: 1, 1, 1>, scalar_prefetch = 0 : i64, scratch_operands = 0 : i64, tpu.core_type = #tpu.core_type<tc>, window_params = [{transform_indices = @transform_0, window_bounds = array<i64: 16, 128>}, {transform_indices = @transform_1, window_bounds = array<i64: 128, 128>}, {transform_indices = @transform_2, window_bounds = array<i64: 128, 128>}, {transform_indices = @transform_3, window_bounds = array<i64: 1, 128>}, {transform_indices = @transform_4, window_bounds = array<i64: 16, 128>}]} {
    %c0_i32 = arith.constant 0 : i32
    %0 = arith.cmpi eq, %arg2, %c0_i32 : i32
    %1 = arith.extui %0 : i1 to i32
    %c0_i32_0 = arith.constant 0 : i32
    %2 = arith.cmpi ne, %1, %c0_i32_0 : i32
    scf.if %2 {
      %c0_10 = arith.constant 0 : index
      %c0_11 = arith.constant 0 : index
      %12 = vector.load %arg6[%c0_10, %c0_11] : memref<1x128xf32, #tpu.memory_space<vmem>>, vector<1x128xf32>
      %13 = vector.shape_cast %12 : vector<1x128xf32> to vector<1x128xf32>
      %14 = vector.broadcast %13 : vector<1x128xf32> to vector<16x128xf32>
      %c0_12 = arith.constant 0 : index
      %c0_13 = arith.constant 0 : index
      %15 = vector.load %arg7[%c0_12, %c0_13] : memref<16x128xf32, #tpu.memory_space<vmem>>, vector<16x128xf32>
      tpu.vector_store %arg7[%c0_12, %c0_13], %14 {strides = array<i32>} : memref<16x128xf32, #tpu.memory_space<vmem>>, vector<16x128xf32>,
    } else {
    }
    %c0 = arith.constant 0 : index
    %c0_1 = arith.constant 0 : index
    %3 = vector.load %arg4[%c0, %c0_1] : memref<128x128xbf16, #tpu.memory_space<vmem>>, vector<128x128xbf16>
    %c0_2 = arith.constant 0 : index
    %c0_3 = arith.constant 0 : index
    %4 = vector.load %arg5[%c0_2, %c0_3] : memref<128x128xi8, #tpu.memory_space<vmem>>, vector<128x128xi8>
    %5 = arith.sitofp %4 : vector<128x128xi8> to vector<128x128xbf16>
    %6 = arith.mulf %3, %5 : vector<128x128xbf16>
    %c0_4 = arith.constant 0 : index
    %c0_5 = arith.constant 0 : index
    %7 = vector.load %arg7[%c0_4, %c0_5] : memref<16x128xf32, #tpu.memory_space<vmem>>, vector<16x128xf32>
    %c0_6 = arith.constant 0 : index
    %c0_7 = arith.constant 0 : index
    %8 = vector.load %arg3[%c0_6, %c0_7] : memref<16x128xbf16, #tpu.memory_space<vmem>>, vector<16x128xbf16>
    %cst = arith.constant dense<0.000000e+00> : vector<16x128xf32>
    %9 = tpu.matmul %8, %6, %cst {dimension_numbers = #tpu.dot_dimension_numbers<[1], [0], [0], [1], [0, 0, 1, 1], [], []>} : vector<16x128xbf16>, vector<128x128xbf16>, vector<16x128xf32> -> vector<16x128xf32>
    %10 = arith.addf %7, %9 : vector<16x128xf32>
    %c0_8 = arith.constant 0 : index
    %c0_9 = arith.constant 0 : index
    %11 = vector.load %arg7[%c0_8, %c0_9] : memref<16x128xf32, #tpu.memory_space<vmem>>, vector<16x128xf32>
    tpu.vector_store %arg7[%c0_8, %c0_9], %10 {strides = array<i32>} : memref<16x128xf32, #tpu.memory_space<vmem>>, vector<16x128xf32>,
    return
  }
  func.func @transform_0(%arg0: i32, %arg1: i32, %arg2: i32) -> (i32, i32) {
    %c0_i32 = arith.constant 0 : i32
    return %arg0, %arg2 : i32, i32
  }
  func.func @transform_1(%arg0: i32, %arg1: i32, %arg2: i32) -> (i32, i32) {
    %c0_i32 = arith.constant 0 : i32
    return %arg2, %arg1 : i32, i32
  }
  func.func @transform_2(%arg0: i32, %arg1: i32, %arg2: i32) -> (i32, i32) {
    %c0_i32 = arith.constant 0 : i32
    return %arg2, %arg1 : i32, i32
  }
  func.func @transform_3(%arg0: i32, %arg1: i32, %arg2: i32) -> (i32, i32) {
    %c0_i32 = arith.constant 0 : i32
    %c0_i32_0 = arith.constant 0 : i32
    return %c0_i32, %arg1 : i32, i32
  }
  func.func @transform_4(%arg0: i32, %arg1: i32, %arg2: i32) -> (i32, i32) {
    %c0_i32 = arith.constant 0 : i32
    return %arg0, %arg1 : i32, i32
  }
}

</mosaic_0001>

<llo_original>
// kernel: tpu_custom_call.1
$region0: #{tpu_custom_call.1}
  #allocation0 [shape = 'u32[]', space=smem, size = 0x4, offset = 0x4, fixed_abs, tag = 'smem constant byte address 0x4 - core index']
  #allocation1 [shape = 'u32[72,128]{1,0:T(1,128)}', space=vmem, size = 0x9000, scoped, tag = 'internal scratch']
  %s0 = inlined_call_operand.hbm [shape: bf16[16,128], index: 0, kind: input, shape index: {}]
  %s1 = inlined_call_operand.hbm [shape: bf16[128,128], index: 1, kind: input, shape index: {}]
  %s2 = inlined_call_operand.hbm [shape: s8[128,128], index: 2, kind: input, shape index: {}]
  %s3 = inlined_call_operand.vmem [shape: f32[1,128], index: 3, kind: input, shape index: {}]
  %s4 = inlined_call_operand.hbm [shape: f32[16,128], index: 4, kind: output, shape index: {}]
  %s5 = sld [smem:[#allocation0]]
  $region42: #{tpu_custom_call.1} parent=0
    _
  %s7 = ssub.s32 1, %s5
  %s8 = scalar_select 0, %s7, %s5
  $region1: #{tpu_custom_call.1} parent=0
    #allocation2 [shape = 'u8[4096]{0}', space=vmem, size = 0x1000, scoped, tag = 'input window, operand 0, single buffered']
    #allocation3 [shape = 's32[1]{0}', space=sflag, size = 0x4, scoped, tag = 'scoped memory for tpu_custom_call.1']
    #allocation4 [shape = 's32[1]{0}', space=sflag, size = 0x4, scoped, tag = 'scoped memory for tpu_custom_call.1']
    #allocation5 [shape = 'u8[32768]{0}', space=vmem, size = 0x8000, scoped, tag = 'input window, operand 1, single buffered']
    #allocation6 [shape = 's32[1]{0}', space=sflag, size = 0x4, scoped, tag = 'scoped memory for tpu_custom_call.1']
    #allocation7 [shape = 'u8[16384]{0}', space=vmem, size = 0x4000, scoped, tag = 'input window, operand 2, single buffered']
    #allocation8 [shape = 'u8[8192]{0}', space=vmem, size = 0x2000, scoped, tag = 'output window, operand 0, single buffered']
    %9 = vsyncpa [#allocation3], 0
    %10 = vsyncpa [#allocation6], 0
    %11 = vsyncpa [#allocation4], 0
    // Predicated region
    $region2: #{tpu_custom_call.1} parent=1 // pred_check
      _
    $region3: #{tpu_custom_call.1} parent=1 // pred_check_branch
      %13 = sbr.rel (0) target = $region5
    $region4: #{tpu_custom_call.1} parent=1 // pred_region
      %15 = vsyncadd [#allocation3], 0
      %s16 = sshll.u32 %s0, 4
      %s17 = int_to_ptr.hbm [resolvable:$true] %s16
      %s18 = sshll.u32 [#allocation2], 4
      %s19 = int_to_ptr.vmem [resolvable:$true] %s18
      %24 = dma.hbm_to_vmem [thread:$0]  %s17, 128, %s19, [#allocation3], 64, 64, 4
    $region5: #{tpu_custom_call.1} parent=1 // pred_fallthru
      _
    // Predicated region
    $region6: #{tpu_custom_call.1} parent=1 // pred_check
      _
    $region7: #{tpu_custom_call.1} parent=1 // pred_check_branch
      %26 = sbr.rel (0) target = $region9
    $region8: #{tpu_custom_call.1} parent=1 // pred_region
      %28 = vsyncadd [#allocation6], 0
      %s29 = sshll.u32 %s1, 4
      %s30 = int_to_ptr.hbm [resolvable:$true] %s29
      %s31 = sshll.u32 [#allocation5], 4
      %s32 = int_to_ptr.vmem [resolvable:$true] %s31
      %37 = dma.hbm_to_vmem [thread:$0]  %s30, 1024, %s32, [#allocation6], 64, 64, 4
    $region9: #{tpu_custom_call.1} parent=1 // pred_fallthru
      _
    // Predicated region
    $region10: #{tpu_custom_call.1} parent=1 // pred_check
      _
    $region11: #{tpu_custom_call.1} parent=1 // pred_check_branch
      %39 = sbr.rel (0) target = $region13
    $region12: #{tpu_custom_call.1} parent=1 // pred_region
      %41 = vsyncadd [#allocation6], 0
      %s42 = sshll.u32 %s2, 4
      %s43 = int_to_ptr.hbm [resolvable:$true] %s42
      %s44 = sshll.u32 [#allocation7], 4
      %s45 = int_to_ptr.vmem [resolvable:$true] %s44
      %50 = dma.hbm_to_vmem [thread:$0]  %s43, 512, %s45, [#allocation6], 128, 128, 8
    $region13: #{tpu_custom_call.1} parent=1 // pred_fallthru
      _
    // Predicated region
    $region14: #{tpu_custom_call.1} parent=1 // pred_check
      _
    $region15: #{tpu_custom_call.1} parent=1 // pred_check_branch
      %52 = sbr.rel (0) target = $region17
    $region16: #{tpu_custom_call.1} parent=1 // pred_region
      _
    $region17: #{tpu_custom_call.1} parent=1 // pred_fallthru
      _
    // Predicated region
    $region18: #{tpu_custom_call.1} parent=1 // pred_check
      _
    $region19: #{tpu_custom_call.1} parent=1 // pred_check_branch
      %54 = sbr.rel (0) target = $region21
    $region20: #{tpu_custom_call.1} parent=1 // pred_region
      %56 = dma.done [#allocation3], 128
    $region21: #{tpu_custom_call.1} parent=1 // pred_fallthru
      _
    // Predicated region
    $region22: #{tpu_custom_call.1} parent=1 // pred_check
      _
    $region23: #{tpu_custom_call.1} parent=1 // pred_check_branch
      %58 = sbr.rel (0) target = $region25
    $region24: #{tpu_custom_call.1} parent=1 // pred_region
      %60 = dma.done [#allocation6], 1024
    $region25: #{tpu_custom_call.1} parent=1 // pred_fallthru
      _
    // Predicated region
    $region26: #{tpu_custom_call.1} parent=1 // pred_check
      _
    $region27: #{tpu_custom_call.1} parent=1 // pred_check_branch
      %62 = sbr.rel (0) target = $region29
    $region28: #{tpu_custom_call.1} parent=1 // pred_region
      %64 = dma.done [#allocation6], 512
    $region29: #{tpu_custom_call.1} parent=1 // pred_fallthru
      _
    %p65 = scmp.eq.s32.totalorder 0, 0
    // Predicated region
    $region30: #{tpu_custom_call.1} parent=1 // pred_check
      %p66 = pneg %p65
    $region31: #{tpu_custom_call.1} parent=1 // pred_check_branch
      %68 = sbr.rel (%p66) target = $region33
    $region32: #{tpu_custom_call.1} parent=1 // pred_region
      %v69 = vld [vmem:[%s3] sm:$0x1]
      %v71 = vperm.slane %v69, 0
      %73 = vst [vmem:[#allocation8] sm:$0xff] %v71
      %74 = vst [vmem:[#allocation8 + $0x8] sm:$0xff] %v71
    $region33: #{tpu_custom_call.1} parent=1 // pred_fallthru
      _
    %v75 = vld [vmem:[#allocation5] sm:$0xf]
    %v76 = vld [vmem:[#allocation5 + $0x4] sm:$0xf]
    %v77 = vld [vmem:[#allocation5 + $0x8] sm:$0xf]
    %v78 = vld [vmem:[#allocation5 + $0xc] sm:$0xf]
    %v79 = vld [vmem:[#allocation5 + $0x10] sm:$0xf]
    %v80 = vld [vmem:[#allocation5 + $0x14] sm:$0xf]
    %v81 = vld [vmem:[#allocation5 + $0x18] sm:$0xf]
    %v82 = vld [vmem:[#allocation5 + $0x1c] sm:$0xf]
    %v83 = vld [vmem:[#allocation5 + $0x20] sm:$0xf]
    %v84 = vld [vmem:[#allocation5 + $0x24] sm:$0xf]
    %v85 = vld [vmem:[#allocation5 + $0x28] sm:$0xf]
    %v86 = vld [vmem:[#allocation5 + $0x2c] sm:$0xf]
    %v87 = vld [vmem:[#allocation5 + $0x30] sm:$0xf]
    %v88 = vld [vmem:[#allocation5 + $0x34] sm:$0xf]
    %v89 = vld [vmem:[#allocation5 + $0x38] sm:$0xf]
    %v90 = vld [vmem:[#allocation5 + $0x3c] sm:$0xf]
    %v91 = vld [vmem:[#allocation7] sm:$0xff]
    %v92 = vld [vmem:[#allocation7 + $0x8] sm:$0xff]
    %v93 = vld [vmem:[#allocation7 + $0x10] sm:$0xff]
    %v94 = vld [vmem:[#allocation7 + $0x18] sm:$0xff]
    %v95 = vunpack.c.0.s8 %v91
    %v96 = vunpack.c.1.s8 %v91
    %v97 = vunpack.c.2.s8 %v91
    %v98 = vunpack.c.3.s8 %v91
    %v99 = vunpack.c.0.s8 %v92
    %v100 = vunpack.c.1.s8 %v92
    %v101 = vunpack.c.2.s8 %v92
    %v102 = vunpack.c.3.s8 %v92
    %v103 = vunpack.c.0.s8 %v93
    %v104 = vunpack.c.1.s8 %v93
    %v105 = vunpack.c.2.s8 %v93
    %v106 = vunpack.c.3.s8 %v93
    %v107 = vunpack.c.0.s8 %v94
    %v108 = vunpack.c.1.s8 %v94
    %v109 = vunpack.c.2.s8 %v94
    %v110 = vunpack.c.3.s8 %v94
    %v111 = vcvt.s32.f32 %v95
    %v112 = vcvt.s32.f32 %v96
    %v113 = vcvt.s32.f32 %v97
    %v114 = vcvt.s32.f32 %v98
    %v115 = vcvt.s32.f32 %v99
    %v116 = vcvt.s32.f32 %v100
    %v117 = vcvt.s32.f32 %v101
    %v118 = vcvt.s32.f32 %v102
    %v119 = vcvt.s32.f32 %v103
    %v120 = vcvt.s32.f32 %v104
    %v121 = vcvt.s32.f32 %v105
    %v122 = vcvt.s32.f32 %v106
    %v123 = vcvt.s32.f32 %v107
    %v124 = vcvt.s32.f32 %v108
    %v125 = vcvt.s32.f32 %v109
    %v126 = vcvt.s32.f32 %v110
    %v127 = vpack.c.bf16 %v111, %v111
    %v128 = vpack.c.bf16 %v112, %v112
    %v129 = vpack.c.bf16 %v113, %v113
    %v130 = vpack.c.bf16 %v114, %v114
    %v131 = vpack.c.bf16 %v115, %v115
    %v132 = vpack.c.bf16 %v116, %v116
    %v133 = vpack.c.bf16 %v117, %v117
    %v134 = vpack.c.bf16 %v118, %v118
    %v135 = vpack.c.bf16 %v119, %v119
    %v136 = vpack.c.bf16 %v120, %v120
    %v137 = vpack.c.bf16 %v121, %v121
    %v138 = vpack.c.bf16 %v122, %v122
    %v139 = vpack.c.bf16 %v123, %v123
    %v140 = vpack.c.bf16 %v124, %v124
    %v141 = vpack.c.bf16 %v125, %v125
    %v142 = vpack.c.bf16 %v126, %v126
    %v143 = vunpack.c.l.bf16 %v75
    %v144 = vunpack.c.l.bf16 %v76
    %v145 = vunpack.c.l.bf16 %v77
    %v146 = vunpack.c.l.bf16 %v78
    %v147 = vunpack.c.l.bf16 %v79
    %v148 = vunpack.c.l.bf16 %v80
    %v149 = vunpack.c.l.bf16 %v81
    %v150 = vunpack.c.l.bf16 %v82
    %v151 = vunpack.c.l.bf16 %v83
    %v152 = vunpack.c.l.bf16 %v84
    %v153 = vunpack.c.l.bf16 %v85
    %v154 = vunpack.c.l.bf16 %v86
    %v155 = vunpack.c.l.bf16 %v87
    %v156 = vunpack.c.l.bf16 %v88
    %v157 = vunpack.c.l.bf16 %v89
    %v158 = vunpack.c.l.bf16 %v90
    %v159 = vunpack.c.l.bf16 %v127
    %v160 = vunpack.c.l.bf16 %v128
    %v161 = vunpack.c.l.bf16 %v129
    %v162 = vunpack.c.l.bf16 %v130
    %v163 = vunpack.c.l.bf16 %v131
    %v164 = vunpack.c.l.bf16 %v132
    %v165 = vunpack.c.l.bf16 %v133
    %v166 = vunpack.c.l.bf16 %v134
    %v167 = vunpack.c.l.bf16 %v135
    %v168 = vunpack.c.l.bf16 %v136
    %v169 = vunpack.c.l.bf16 %v137
    %v170 = vunpack.c.l.bf16 %v138
    %v171 = vunpack.c.l.bf16 %v139
    %v172 = vunpack.c.l.bf16 %v140
    %v173 = vunpack.c.l.bf16 %v141
    %v174 = vunpack.c.l.bf16 %v142
    %v175 = vmul.f32 %v143, %v159
    %v176 = vmul.f32 %v144, %v160
    %v177 = vmul.f32 %v145, %v161
    %v178 = vmul.f32 %v146, %v162
    %v179 = vmul.f32 %v147, %v163
    %v180 = vmul.f32 %v148, %v164
    %v181 = vmul.f32 %v149, %v165
    %v182 = vmul.f32 %v150, %v166
    %v183 = vmul.f32 %v151, %v167
    %v184 = vmul.f32 %v152, %v168
    %v185 = vmul.f32 %v153, %v169
    %v186 = vmul.f32 %v154, %v170
    %v187 = vmul.f32 %v155, %v171
    %v188 = vmul.f32 %v156, %v172
    %v189 = vmul.f32 %v157, %v173
    %v190 = vmul.f32 %v158, %v174
    %v191 = vpack.c.bf16 %v176, %v175
    %v192 = vpack.c.bf16 %v178, %v177
    %v193 = vpack.c.bf16 %v180, %v179
    %v194 = vpack.c.bf16 %v182, %v181
    %v195 = vpack.c.bf16 %v184, %v183
    %v196 = vpack.c.bf16 %v186, %v185
    %v197 = vpack.c.bf16 %v188, %v187
    %v198 = vpack.c.bf16 %v190, %v189
    %v199 = vld [vmem:[#allocation8] sm:$0xff]
    %v200 = vld [vmem:[#allocation8 + $0x8] sm:$0xff]
    %v201 = vld [vmem:[#allocation2] sm:$0xf]
    %v202 = vld [vmem:[#allocation2 + $0x4] sm:$0xf]
    %v205 = vunpack.c.l.b16 %v201
    %v206 = vunpack.c.l.b16 %v202
    %v207 = vpack.c.b16 %v206, %v205
    %209 = vmatpush.bf16.msra.mxu0 %v198
    %210 = vmatpush.bf16.msra.mxu0 %v197
    %211 = vmatpush.bf16.msra.mxu0 %v196
    %212 = vmatpush.bf16.msra.mxu0 %v195
    %213 = vmatpush.bf16.msra.mxu0 %v194
    %214 = vmatpush.bf16.msra.mxu0 %v193
    %215 = vmatpush.bf16.msra.mxu0 %v192
    %216 = vmatpush.bf16.msra.mxu0 %v191
    %217 = vmatmul.bf16.gmra.mxu0 %v207
    %v218 = vpop.f32.mrf.mxu0
    %v219 = vadd.f32 0.0, %v218
    %v220 = vpop.f32.mrf.mxu0
    %v221 = vadd.f32 0.0, %v220
    %222 = vdwg.mxu0
    %v223 = vadd.f32 %v199, %v219
    %v224 = vadd.f32 %v200, %v221
    %225 = vst [vmem:[#allocation8] sm:$0xff] %v223
    %226 = vst [vmem:[#allocation8 + $0x8] sm:$0xff] %v224
    // Predicated region
    $region34: #{tpu_custom_call.1} parent=1 // pred_check
      _
    $region35: #{tpu_custom_call.1} parent=1 // pred_check_branch
      %228 = sbr.rel (0) target = $region37
    $region36: #{tpu_custom_call.1} parent=1 // pred_region
      %230 = vsyncadd [#allocation4], 0
      %s231 = sshll.u32 [#allocation8], 4
      %s232 = int_to_ptr.vmem [resolvable:$true] %s231
      %s233 = sshll.u32 %s4, 4
      %s234 = int_to_ptr.hbm [resolvable:$true] %s233
      %239 = dma.vmem_to_hbm [thread:$0]  %s232, 256, %s234, [#allocation4], 128, 128, 8
    $region37: #{tpu_custom_call.1} parent=1 // pred_fallthru
      _
    // Predicated region
    $region38: #{tpu_custom_call.1} parent=1 // pred_check
      _
    $region39: #{tpu_custom_call.1} parent=1 // pred_check_branch
      %241 = sbr.rel (0) target = $region41
    $region40: #{tpu_custom_call.1} parent=1 // pred_region
      %243 = dma.done [#allocation4], 256
    $region41: #{tpu_custom_call.1} parent=1 // pred_fallthru
      _
    %244 = vsyncpa [#allocation3], 1
    %245 = vsyncpa [#allocation6], 1
    %246 = vsyncpa [#allocation4], 1

</llo_original>
